<compile_context>
chip_gen: v7x
topology: tpu7x:2x2x1
jax: 0.10.0
libtpu: 0.0.40
codegen_flags: <defaults>
</compile_context>

<pallas_src>
import functools

import jax
import jax.numpy as jnp
from jax.experimental import pallas as pl
from jax.experimental.pallas import tpu as pltpu

_LANE = 128
# Conservative per-step VMEM budget for the double-buffered x/out tiles:
# fits v5e's 16 MiB scoped default and v7x's 32 MiB default (64 MiB physical).
_VMEM_TILE_BUDGET = 12 * 1024 * 1024


def _round_up(n, m):
    return ((n + m - 1) // m) * m


def _mlp_kernel(x_ref, w1_ref, b1_ref, w2_ref, b2_ref, o_ref):
    # In-VMEM cast of the x tile to the MXU operand dtype (no-op for f32;
    # avoids a wrapper-side XLA cast pass over the whole batch for bf16).
    x = x_ref[...].astype(w1_ref.dtype)
    # fc1: (TB, D_in) @ (D_in, H) with f32 accumulation on the MXU.
    h = jnp.dot(x, w1_ref[...], preferred_element_type=jnp.float32)
    # Bias add + ReLU in f32 on the VPU (v5e-safe epilogue).
    h = jnp.maximum(h + b1_ref[...], 0.0)
    # fc2 against the lane-padded weight (lane-dense MXU load), f32 acc.
    out = jnp.dot(h.astype(w2_ref.dtype), w2_ref[...],
                  preferred_element_type=jnp.float32)
    # Store only the real class columns -> narrow, unpadded HBM writeback.
    c = o_ref.shape[-1]
    o_ref[...] = (out[:, :c] + b2_ref[...]).astype(o_ref.dtype)


def prepare_params(w1, b1, w2, b2, compute_dtype=jnp.float32):
    """One-time parameter prep (outside the hot path).

    w1: (H, D_in), b1: (H,), w2: (C, H), b2: (C,)  -- PyTorch nn.Linear layout.
    Returns (in, out)-layout weights, (1, out) f32 bias rows; fc2 weight columns
    are zero-padded to a multiple of 128 lanes (bias stays unpadded at C).
    """
    H, D_in = w1.shape
    C = w2.shape[0]
    C_pad = _round_up(C, _LANE)

    w1_t = jnp.asarray(w1, jnp.float32).T.astype(compute_dtype)        # (D_in, H)
    b1_r = jnp.asarray(b1, jnp.float32).reshape(1, H)                  # (1, H) f32
    w2_t = jnp.zeros((H, C_pad), compute_dtype)
    w2_t = w2_t.at[:, :C].set(jnp.asarray(w2, jnp.float32).T.astype(compute_dtype))
    b2_r = jnp.asarray(b2, jnp.float32).reshape(1, C)                  # (1, C) f32
    return w1_t, b1_r, w2_t, b2_r


@functools.partial(jax.jit, static_argnames=("block_b", "out_dtype"))
def _mlp_pallas(x, w1_t, b1_r, w2_t, b2_r, *, block_b=4096, out_dtype=jnp.float32):
    B, D_in = x.shape
    H = w1_t.shape[1]
    C_pad = w2_t.shape[1]
    C = b2_r.shape[1]

    x_bytes = x.dtype.itemsize
    w_bytes = jnp.dtype(w1_t.dtype).itemsize
    o_bytes = jnp.dtype(out_dtype).itemsize

    # Sublane multiple for the batch tile: 16 keeps packed bf16 operands
    # sub-tile aligned; 8 for the pure f32 path.
    mult = 16 if w_bytes < 4 else 8

    # Largest batch tile that (a) respects block_b, (b) leaves >= 4 grid steps
    # on large batches (feeds both v7x TensorCores), (c) keeps double-buffered
    # x/out tiles plus resident weights inside the VMEM budget.
    TB = min(block_b, _round_up(B, mult))
    if B >= 4 * mult:
        TB = min(TB, _round_up(-(-B // 4), mult))
    resident = 2 * ((D_in * H + H * C_pad) * w_bytes + (H + C) * 4)
    per_row = 2 * (D_in * x_bytes + C * o_bytes)
    tb_vmem = max(mult, ((_VMEM_TILE_BUDGET - resident) // per_row) // mult * mult)
    TB = max(mult, min(TB, tb_vmem))

    B_pad = _round_up(B, TB)
    x_p = x if B_pad == B else jnp.pad(x, ((0, B_pad - B), (0, 0)))

    cost = pl.CostEstimate(
        flops=2 * B_pad * (D_in * H + H * C_pad),
        transcendentals=0,
        bytes_accessed=(B_pad * D_in * x_bytes + B_pad * C * o_bytes
                        + (D_in * H + H * C_pad) * w_bytes + (H + C) * 4),
    )

    return pl.pallas_call(
        _mlp_kernel,
        out_shape=jax.ShapeDtypeStruct((B_pad, C), out_dtype),
        grid_spec=pl.GridSpec(
            grid=(B_pad // TB,),
            in_specs=[
                pl.BlockSpec((TB, D_in), lambda i: (i, 0)),    # x tile (pipelined)
                pl.BlockSpec((D_in, H), lambda i: (0, 0)),     # w1 resident
                pl.BlockSpec((1, H), lambda i: (0, 0)),        # b1 resident
                pl.BlockSpec((H, C_pad), lambda i: (0, 0)),    # w2 resident (lane-padded)
                pl.BlockSpec((1, C), lambda i: (0, 0)),        # b2 resident
            ],
            out_specs=pl.BlockSpec((TB, C), lambda i: (i, 0)),  # narrow, unpadded store
        ),
        compiler_params=pltpu.CompilerParams(
            dimension_semantics=("parallel",)),
        cost_estimate=cost,
    )(x_p, w1_t, b1_r, w2_t, b2_r)


def net_forward(x, params, *, block_b=4096, out_dtype=jnp.float32):
    """x: (B, input_size) f32; params from prepare_params. Returns (B, C)."""
    w1_t, b1_r, w2_t, b2_r = params
    out = _mlp_pallas(x, w1_t, b1_r, w2_t, b2_r,
                      block_b=block_b, out_dtype=out_dtype)
    return out[: x.shape[0]]   # column slice no longer needed (unpadded output)


if __name__ == "__main__":
    # Shapes implied by Net(input_size, hidden_size, num_classes)
    batch, input_size, hidden_size, num_classes = 8, 32, 64, 16

    key = jax.random.PRNGKey(0)
    kx, kw1, kb1, kw2, kb2, kx2 = jax.random.split(key, 6)

    x = jax.random.normal(kx, (batch, input_size), dtype=jnp.float32)

    # Deterministic synthetic parameters (PyTorch nn.Linear shapes / init range).
    bound1 = 1.0 / (input_size ** 0.5)
    w1 = jax.random.uniform(kw1, (hidden_size, input_size),
                            minval=-bound1, maxval=bound1, dtype=jnp.float32)
    b1 = jax.random.uniform(kb1, (hidden_size,),
                            minval=-bound1, maxval=bound1, dtype=jnp.float32)
    bound2 = 1.0 / (hidden_size ** 0.5)
    w2 = jax.random.uniform(kw2, (num_classes, hidden_size),
                            minval=-bound2, maxval=bound2, dtype=jnp.float32)
    b2 = jax.random.uniform(kb2, (num_classes,),
                            minval=-bound2, maxval=bound2, dtype=jnp.float32)

    def ref_fn(xx):
        return jnp.maximum(xx @ w1.T + b1, 0.0) @ w2.T + b2

    # f32 path, small batch (single grid step).
    params_f32 = prepare_params(w1, b1, w2, b2)
    out = net_forward(x, params_f32)
    jax.block_until_ready(out)
    assert out.shape == (batch, num_classes)
    assert jnp.allclose(out, ref_fn(x), atol=1e-4, rtol=1e-4)

    # f32 path, larger ragged batch -> exercises batch tiling, row padding,
    # and the >=4-grid-step tile cap.
    x_big = jax.random.normal(kx2, (300, input_size), dtype=jnp.float32)
    out_big = net_forward(x_big, params_f32)
    jax.block_until_ready(out_big)
    assert out_big.shape == (300, num_classes)
    assert jnp.allclose(out_big, ref_fn(x_big), atol=1e-4, rtol=1e-4)

    # f32 path with an explicit small block_b override (multi-step pipeline).
    out_small_tile = net_forward(x_big, params_f32, block_b=128)
    jax.block_until_ready(out_small_tile)
    assert jnp.allclose(out_small_tile, ref_fn(x_big), atol=1e-4, rtol=1e-4)

    # bf16 MXU operands / f32 accumulation path (x cast happens in-kernel).
    params_bf16 = prepare_params(w1, b1, w2, b2, compute_dtype=jnp.bfloat16)
    out_bf16 = net_forward(x_big, params_bf16)
    jax.block_until_ready(out_bf16)
    assert out_bf16.shape == (300, num_classes)
    assert jnp.allclose(out_bf16, ref_fn(x_big), atol=5e-2, rtol=5e-2)

    print("KERNEL_OK")
</pallas_src>

<mosaic_0001>
module attributes {stable_mosaic.version = 11 : i64} {
  func.func @_mlp_kernel(%arg0: i32, %arg1: memref<8x32xf32, #tpu.memory_space<vmem>>, %arg2: memref<32x64xf32, #tpu.memory_space<vmem>>, %arg3: memref<1x64xf32, #tpu.memory_space<vmem>>, %arg4: memref<64x128xf32, #tpu.memory_space<vmem>>, %arg5: memref<1x16xf32, #tpu.memory_space<vmem>>, %arg6: memref<8x16xf32, #tpu.memory_space<vmem>>) attributes {dimension_semantics = [#tpu.dimension_semantics<parallel>], iteration_bounds = array<i64: 1>, scalar_prefetch = 0 : i64, scratch_operands = 0 : i64, tpu.core_type = #tpu.core_type<tc>, window_params = [{transform_indices = @transform_0, window_bounds = array<i64: 8, 32>}, {pipeline_mode = #tpu.pipeline_mode<synchronous>, transform_indices = @transform_1, window_bounds = array<i64: 32, 64>}, {pipeline_mode = #tpu.pipeline_mode<synchronous>, transform_indices = @transform_2, window_bounds = array<i64: 1, 64>}, {pipeline_mode = #tpu.pipeline_mode<synchronous>, transform_indices = @transform_3, window_bounds = array<i64: 64, 128>}, {pipeline_mode = #tpu.pipeline_mode<synchronous>, transform_indices = @transform_4, window_bounds = array<i64: 1, 16>}, {transform_indices = @transform_5, window_bounds = array<i64: 8, 16>}]} {
    %c0 = arith.constant 0 : index
    %c0_0 = arith.constant 0 : index
    %0 = vector.load %arg1[%c0, %c0_0] : memref<8x32xf32, #tpu.memory_space<vmem>>, vector<8x32xf32>
    %c0_1 = arith.constant 0 : index
    %c0_2 = arith.constant 0 : index
    %1 = vector.load %arg2[%c0_1, %c0_2] : memref<32x64xf32, #tpu.memory_space<vmem>>, vector<32x64xf32>
    %cst = arith.constant dense<0.000000e+00> : vector<8x64xf32>
    %2 = tpu.matmul %0, %1, %cst {dimension_numbers = #tpu.dot_dimension_numbers<[1], [0], [0], [1], [0, 0, 1, 1], [], []>} : vector<8x32xf32>, vector<32x64xf32>, vector<8x64xf32> -> vector<8x64xf32>
    %c0_3 = arith.constant 0 : index
    %c0_4 = arith.constant 0 : index
    %3 = vector.load %arg3[%c0_3, %c0_4] : memref<1x64xf32, #tpu.memory_space<vmem>>, vector<1x64xf32>
    %4 = vector.broadcast %3 : vector<1x64xf32> to vector<8x64xf32>
    %5 = arith.addf %2, %4 : vector<8x64xf32>
    %cst_5 = arith.constant 0.000000e+00 : f32
    %6 = vector.broadcast %cst_5 : f32 to vector<8x64xf32>
    %7 = arith.maximumf %5, %6 : vector<8x64xf32>
    %c0_6 = arith.constant 0 : index
    %c0_7 = arith.constant 0 : index
    %8 = vector.load %arg4[%c0_6, %c0_7] : memref<64x128xf32, #tpu.memory_space<vmem>>, vector<64x128xf32>
    %cst_8 = arith.constant dense<0.000000e+00> : vector<8x128xf32>
    %9 = tpu.matmul %7, %8, %cst_8 {dimension_numbers = #tpu.dot_dimension_numbers<[1], [0], [0], [1], [0, 0, 1, 1], [], []>} : vector<8x64xf32>, vector<64x128xf32>, vector<8x128xf32> -> vector<8x128xf32>
    %10 = vector.extract_strided_slice %9 {offsets = [0, 0], sizes = [8, 16], strides = [1, 1]} : vector<8x128xf32> to vector<8x16xf32>
    %c0_9 = arith.constant 0 : index
    %c0_10 = arith.constant 0 : index
    %11 = vector.load %arg5[%c0_9, %c0_10] : memref<1x16xf32, #tpu.memory_space<vmem>>, vector<1x16xf32>
    %12 = vector.broadcast %11 : vector<1x16xf32> to vector<8x16xf32>
    %13 = arith.addf %10, %12 : vector<8x16xf32>
    %c0_11 = arith.constant 0 : index
    %c0_12 = arith.constant 0 : index
    %14 = vector.load %arg6[%c0_11, %c0_12] : memref<8x16xf32, #tpu.memory_space<vmem>>, vector<8x16xf32>
    tpu.vector_store %arg6[%c0_11, %c0_12], %13 {strides = array<i32>} : memref<8x16xf32, #tpu.memory_space<vmem>>, vector<8x16xf32>,
    return
  }
  func.func @transform_0(%arg0: i32) -> (i32, i32) {
    %c0_i32 = arith.constant 0 : i32
    %c0_i32_0 = arith.constant 0 : i32
    return %arg0, %c0_i32 : i32, i32
  }
  func.func @transform_1(%arg0: i32) -> (i32, i32) {
    %c0_i32 = arith.constant 0 : i32
    %c0_i32_0 = arith.constant 0 : i32
    %c0_i32_1 = arith.constant 0 : i32
    return %c0_i32, %c0_i32_0 : i32, i32
  }
  func.func @transform_2(%arg0: i32) -> (i32, i32) {
    %c0_i32 = arith.constant 0 : i32
    %c0_i32_0 = arith.constant 0 : i32
    %c0_i32_1 = arith.constant 0 : i32
    return %c0_i32, %c0_i32_0 : i32, i32
  }
  func.func @transform_3(%arg0: i32) -> (i32, i32) {
    %c0_i32 = arith.constant 0 : i32
    %c0_i32_0 = arith.constant 0 : i32
    %c0_i32_1 = arith.constant 0 : i32
    return %c0_i32, %c0_i32_0 : i32, i32
  }
  func.func @transform_4(%arg0: i32) -> (i32, i32) {
    %c0_i32 = arith.constant 0 : i32
    %c0_i32_0 = arith.constant 0 : i32
    %c0_i32_1 = arith.constant 0 : i32
    return %c0_i32, %c0_i32_0 : i32, i32
  }
  func.func @transform_5(%arg0: i32) -> (i32, i32) {
    %c0_i32 = arith.constant 0 : i32
    %c0_i32_0 = arith.constant 0 : i32
    return %arg0, %c0_i32 : i32, i32
  }
}

</mosaic_0001>

<llo_original>
// kernel: _mlp_pallas.1
$region0: #{_mlp_pallas.1}
  #allocation0 [shape = 'u32[]', space=smem, size = 0x4, offset = 0x4, fixed_abs, tag = 'smem constant byte address 0x4 - core index']
  #allocation1 [shape = 'u32[144,128]{1,0:T(1,128)}', space=vmem, size = 0x12000, scoped, tag = 'internal scratch']
  %s0 = inlined_call_operand.hbm [shape: f32[8,32], index: 0, kind: input, shape index: {}]
  %s1 = inlined_call_operand.hbm [shape: f32[32,64], index: 1, kind: input, shape index: {}]
  %s2 = inlined_call_operand.vmem [shape: f32[1,64], index: 2, kind: input, shape index: {}]
  %s3 = inlined_call_operand.hbm [shape: f32[64,128], index: 3, kind: input, shape index: {}]
  %s4 = inlined_call_operand.vmem [shape: f32[1,16], index: 4, kind: input, shape index: {}]
  %s5 = inlined_call_operand.hbm [shape: f32[8,16], index: 5, kind: output, shape index: {}]
  %s6 = sld [smem:[#allocation0]]
  $region42: #{_mlp_pallas.1} parent=0
    _
  %s8 = ssub.s32 1, %s6
  %s9 = scalar_select 0, %s8, %s6
  $region1: #{_mlp_pallas.1} parent=0
    #allocation2 [shape = 'u8[4096]{0}', space=vmem, size = 0x1000, scoped, tag = 'input window, operand 0, single buffered']
    #allocation3 [shape = 's32[1]{0}', space=sflag, size = 0x4, scoped, tag = 'scoped memory for _mlp_pallas.1']
    #allocation4 [shape = 's32[1]{0}', space=sflag, size = 0x4, scoped, tag = 'scoped memory for _mlp_pallas.1']
    #allocation5 [shape = 'u8[16384]{0}', space=vmem, size = 0x4000, scoped, tag = 'input window, operand 1, single buffered']
    #allocation6 [shape = 's32[1]{0}', space=sflag, size = 0x4, scoped, tag = 'scoped memory for _mlp_pallas.1']
    #allocation7 [shape = 'u8[32768]{0}', space=vmem, size = 0x8000, scoped, tag = 'input window, operand 3, single buffered']
    #allocation8 [shape = 'u8[4096]{0}', space=vmem, size = 0x1000, scoped, tag = 'output window, operand 0, single buffered']
    %10 = vsyncpa [#allocation3], 0
    %11 = vsyncpa [#allocation6], 0
    %12 = vsyncpa [#allocation4], 0
    // Predicated region
    $region2: #{_mlp_pallas.1} parent=1 // pred_check
      _
    $region3: #{_mlp_pallas.1} parent=1 // pred_check_branch
      %14 = sbr.rel (0) target = $region5
    $region4: #{_mlp_pallas.1} parent=1 // pred_region
      %s16 = ssub.s32 128, 128
      %17 = vsyncadd [#allocation3], %s16
      %s19 = sshll.u32 [#allocation2], 4
      %s20 = int_to_ptr.vmem [resolvable:$true] %s19
      %22 = dma.hbm_to_vmem [thread:$0]  %s0, 128, %s20, [#allocation3]
    $region5: #{_mlp_pallas.1} parent=1 // pred_fallthru
      _
    // Predicated region
    $region6: #{_mlp_pallas.1} parent=1 // pred_check
      _
    $region7: #{_mlp_pallas.1} parent=1 // pred_check_branch
      %24 = sbr.rel (0) target = $region9
    $region8: #{_mlp_pallas.1} parent=1 // pred_region
      %s26 = ssub.s32 512, 512
      %27 = vsyncadd [#allocation6], %s26
      %s28 = sshll.u32 [#allocation5], 4
      %s29 = int_to_ptr.vmem [resolvable:$true] %s28
      %34 = dma.hbm_to_vmem [thread:$0]  %s1, 512, %s29, [#allocation6], 128, 128, 8
    $region9: #{_mlp_pallas.1} parent=1 // pred_fallthru
      _
    // Predicated region
    $region10: #{_mlp_pallas.1} parent=1 // pred_check
      _
    $region11: #{_mlp_pallas.1} parent=1 // pred_check_branch
      %36 = sbr.rel (0) target = $region13
    $region12: #{_mlp_pallas.1} parent=1 // pred_region
      _
    $region13: #{_mlp_pallas.1} parent=1 // pred_fallthru
      _
    // Predicated region
    $region14: #{_mlp_pallas.1} parent=1 // pred_check
      _
    $region15: #{_mlp_pallas.1} parent=1 // pred_check_branch
      %38 = sbr.rel (0) target = $region17
    $region16: #{_mlp_pallas.1} parent=1 // pred_region
      %s40 = ssub.s32 1024, 1024
      %41 = vsyncadd [#allocation6], %s40
      %s42 = sshll.u32 [#allocation7], 4
      %s43 = int_to_ptr.vmem [resolvable:$true] %s42
      %48 = dma.hbm_to_vmem [thread:$0]  %s3, 1024, %s43, [#allocation6], 128, 128, 8
    $region17: #{_mlp_pallas.1} parent=1 // pred_fallthru
      _
    // Predicated region
    $region18: #{_mlp_pallas.1} parent=1 // pred_check
      _
    $region19: #{_mlp_pallas.1} parent=1 // pred_check_branch
      %50 = sbr.rel (0) target = $region21
    $region20: #{_mlp_pallas.1} parent=1 // pred_region
      _
    $region21: #{_mlp_pallas.1} parent=1 // pred_fallthru
      _
    // Predicated region
    $region22: #{_mlp_pallas.1} parent=1 // pred_check
      _
    $region23: #{_mlp_pallas.1} parent=1 // pred_check_branch
      %52 = sbr.rel (0) target = $region25
    $region24: #{_mlp_pallas.1} parent=1 // pred_region
      %53 = dma.done [#allocation3], 128
    $region25: #{_mlp_pallas.1} parent=1 // pred_fallthru
      _
    // Predicated region
    $region26: #{_mlp_pallas.1} parent=1 // pred_check
      _
    $region27: #{_mlp_pallas.1} parent=1 // pred_check_branch
      %55 = sbr.rel (0) target = $region29
    $region28: #{_mlp_pallas.1} parent=1 // pred_region
      %56 = dma.done [#allocation6], 512
    $region29: #{_mlp_pallas.1} parent=1 // pred_fallthru
      _
    // Predicated region
    $region30: #{_mlp_pallas.1} parent=1 // pred_check
      _
    $region31: #{_mlp_pallas.1} parent=1 // pred_check_branch
      %58 = sbr.rel (0) target = $region33
    $region32: #{_mlp_pallas.1} parent=1 // pred_region
      %59 = dma.done [#allocation6], 1024
    $region33: #{_mlp_pallas.1} parent=1 // pred_fallthru
      _
    %v60 = vld [vmem:[#allocation2] sm:$0xff]
    %v61 = vld [vmem:[#allocation5] sm:$0xff]
    %v62 = vld [vmem:[#allocation5 + $0x8] sm:$0xff]
    %v63 = vld [vmem:[#allocation5 + $0x10] sm:$0xff]
    %v64 = vld [vmem:[#allocation5 + $0x18] sm:$0xff]
    %v65 = vld [vmem:[%s2] sm:$0x1]
    %v67 = vlaneseq
    %v68 = vshrl.u32 %v67, 7
    %v69 = vsub.s32 0, %v68
    %v70 = vrot.slane %v65, %v69
    %vm72 = vcmask 261120
    %v74 = vsel %vm72, %v60, 0
    %76 = vmatprep.subr.mxu0 0.0
    %77 = vmatpush1.msra.mxu0 %v61
    %78 = vmatprep.subr.mxu0 0.0
    %79 = vmatpush1.msra.mxu0 %v62
    %80 = vmatprep.subr.mxu0 0.0
    %81 = vmatpush1.msra.mxu0 %v63
    %82 = vmatprep.subr.mxu0 0.0
    %83 = vmatpush1.msra.mxu0 %v64
    %84 = vmatprep.subr.mxu0 0.0
    %85 = vmatpush1.msra.mxu0 0.0
    %86 = vmatprep.subr.mxu0 0.0
    %87 = vmatpush1.msra.mxu0 0.0
    %88 = vmatprep.subr.mxu0 0.0
    %89 = vmatpush1.msra.mxu0 0.0
    %90 = vmatprep.subr.mxu0 0.0
    %91 = vmatpush1.msra.mxu0 0.0
    %92 = vmatprep.subr.mxu0 0.0
    %93 = vmatpush1.msra.mxu0 0.0
    %94 = vmatprep.subr.mxu0 0.0
    %95 = vmatpush1.msra.mxu0 0.0
    %96 = vmatprep.subr.mxu0 0.0
    %97 = vmatpush1.msra.mxu0 0.0
    %98 = vmatprep.subr.mxu0 0.0
    %99 = vmatpush1.msra.mxu0 0.0
    %100 = vmatprep.subr.mxu0 0.0
    %101 = vmatpush1.msra.mxu0 0.0
    %102 = vmatprep.subr.mxu0 0.0
    %103 = vmatpush1.msra.mxu0 0.0
    %104 = vmatprep.subr.mxu0 0.0
    %105 = vmatpush1.msra.mxu0 0.0
    %106 = vmatprep.subr.mxu0 0.0
    %107 = vmatpush1.msra.mxu0 0.0
    %108 = vmatprep.subr.mxu0 0.0
    %109 = vmatpush1.msra.mxu0 0.0
    %110 = vmatprep.subr.mxu0 0.0
    %111 = vmatpush1.msra.mxu0 0.0
    %112 = vmatprep.subr.mxu0 0.0
    %113 = vmatpush1.msra.mxu0 0.0
    %114 = vmatprep.subr.mxu0 0.0
    %115 = vmatpush1.msra.mxu0 0.0
    %116 = vmatprep.subr.mxu0 0.0
    %117 = vmatpush1.msra.mxu0 0.0
    %118 = vmatprep.subr.mxu0 0.0
    %119 = vmatpush1.msra.mxu0 0.0
    %120 = vmatprep.subr.mxu0 0.0
    %121 = vmatpush1.msra.mxu0 0.0
    %122 = vmatprep.subr.mxu0 0.0
    %123 = vmatpush1.msra.mxu0 0.0
    %124 = vmatprep.subr.mxu0 0.0
    %125 = vmatpush1.msra.mxu0 0.0
    %126 = vmatprep.subr.mxu0 0.0
    %127 = vmatpush1.msra.mxu0 0.0
    %128 = vmatprep.subr.mxu0 0.0
    %129 = vmatpush1.msra.mxu0 0.0
    %130 = vmatprep.subr.mxu0 0.0
    %131 = vmatpush1.msra.mxu0 0.0
    %132 = vmatprep.subr.mxu0 0.0
    %133 = vmatpush1.msra.mxu0 0.0
    %134 = vmatprep.subr.mxu0 0.0
    %135 = vmatpush1.msra.mxu0 0.0
    %136 = vmatprep.subr.mxu0 0.0
    %137 = vmatpush1.msra.mxu0 0.0
    %138 = vmatprep.subr.mxu0 0.0
    %139 = vmatpush1.msra.mxu0 0.0
    %140 = vmatprep.mubr.f32.mxu0 0.0
    %141 = vmatmul.mubr.f32.gmra.mrb[0].mxu0 %v74
    %v142 = vpop.f32.mrb[0].mxu0
    %v143 = vadd.f32 %v70, %v142
    %v144 = vpop.f32.mrb[0].mxu0
    %145 = vdwg.mxu0
    %v146 = vmax.f32 %v143, 0.0
    %v147 = vld [vmem:[#allocation7] sm:$0xff]
    %v148 = vld [vmem:[#allocation7 + $0x8] sm:$0xff]
    %v149 = vld [vmem:[#allocation7 + $0x10] sm:$0xff]
    %v150 = vld [vmem:[#allocation7 + $0x18] sm:$0xff]
    %v151 = vld [vmem:[#allocation7 + $0x20] sm:$0xff]
    %v152 = vld [vmem:[#allocation7 + $0x28] sm:$0xff]
    %v153 = vld [vmem:[#allocation7 + $0x30] sm:$0xff]
    %v154 = vld [vmem:[#allocation7 + $0x38] sm:$0xff]
    %vm155 = vcmask 523264
    %v157 = vsel %vm155, %v146, 0
    %159 = vmatprep.subr.mxu0 0.0
    %160 = vmatpush1.msra.mxu0 %v147
    %161 = vmatprep.subr.mxu0 0.0
    %162 = vmatpush1.msra.mxu0 %v148
    %163 = vmatprep.subr.mxu0 0.0
    %164 = vmatpush1.msra.mxu0 %v149
    %165 = vmatprep.subr.mxu0 0.0
    %166 = vmatpush1.msra.mxu0 %v150
    %167 = vmatprep.subr.mxu0 0.0
    %168 = vmatpush1.msra.mxu0 %v151
    %169 = vmatprep.subr.mxu0 0.0
    %170 = vmatpush1.msra.mxu0 %v152
    %171 = vmatprep.subr.mxu0 0.0
    %172 = vmatpush1.msra.mxu0 %v153
    %173 = vmatprep.subr.mxu0 0.0
    %174 = vmatpush1.msra.mxu0 %v154
    %175 = vmatprep.subr.mxu0 0.0
    %176 = vmatpush1.msra.mxu0 0.0
    %177 = vmatprep.subr.mxu0 0.0
    %178 = vmatpush1.msra.mxu0 0.0
    %179 = vmatprep.subr.mxu0 0.0
    %180 = vmatpush1.msra.mxu0 0.0
    %181 = vmatprep.subr.mxu0 0.0
    %182 = vmatpush1.msra.mxu0 0.0
    %183 = vmatprep.subr.mxu0 0.0
    %184 = vmatpush1.msra.mxu0 0.0
    %185 = vmatprep.subr.mxu0 0.0
    %186 = vmatpush1.msra.mxu0 0.0
    %187 = vmatprep.subr.mxu0 0.0
    %188 = vmatpush1.msra.mxu0 0.0
    %189 = vmatprep.subr.mxu0 0.0
    %190 = vmatpush1.msra.mxu0 0.0
    %191 = vmatprep.subr.mxu0 0.0
    %192 = vmatpush1.msra.mxu0 0.0
    %193 = vmatprep.subr.mxu0 0.0
    %194 = vmatpush1.msra.mxu0 0.0
    %195 = vmatprep.subr.mxu0 0.0
    %196 = vmatpush1.msra.mxu0 0.0
    %197 = vmatprep.subr.mxu0 0.0
    %198 = vmatpush1.msra.mxu0 0.0
    %199 = vmatprep.subr.mxu0 0.0
    %200 = vmatpush1.msra.mxu0 0.0
    %201 = vmatprep.subr.mxu0 0.0
    %202 = vmatpush1.msra.mxu0 0.0
    %203 = vmatprep.subr.mxu0 0.0
    %204 = vmatpush1.msra.mxu0 0.0
    %205 = vmatprep.subr.mxu0 0.0
    %206 = vmatpush1.msra.mxu0 0.0
    %207 = vmatprep.subr.mxu0 0.0
    %208 = vmatpush1.msra.mxu0 0.0
    %209 = vmatprep.subr.mxu0 0.0
    %210 = vmatpush1.msra.mxu0 0.0
    %211 = vmatprep.subr.mxu0 0.0
    %212 = vmatpush1.msra.mxu0 0.0
    %213 = vmatprep.subr.mxu0 0.0
    %214 = vmatpush1.msra.mxu0 0.0
    %215 = vmatprep.subr.mxu0 0.0
    %216 = vmatpush1.msra.mxu0 0.0
    %217 = vmatprep.subr.mxu0 0.0
    %218 = vmatpush1.msra.mxu0 0.0
    %219 = vmatprep.subr.mxu0 0.0
    %220 = vmatpush1.msra.mxu0 0.0
    %221 = vmatprep.subr.mxu0 0.0
    %222 = vmatpush1.msra.mxu0 0.0
    %223 = vmatprep.mubr.f32.mxu0 0.0
    %224 = vmatmul.mubr.f32.gmra.mrb[0].mxu0 %v157
    %v225 = vpop.f32.mrb[0].mxu0
    %v226 = vadd.f32 0.0, %v225
    %v227 = vpop.f32.mrb[0].mxu0
    %228 = vdwg.mxu0
    %v229 = vld [vmem:[%s4] sm:$0x1]
    %v231 = vlaneseq
    %v232 = vshrl.u32 %v231, 7
    %v233 = vsub.s32 0, %v232
    %v234 = vrot.slane %v229, %v233
    %v236 = vadd.f32 %v226, %v234
    %vm237 = vcmask 130048
    %238 = vst.msk [vmem:[#allocation8] sm:$0xff] %vm237, %v236
    // Predicated region
    $region34: #{_mlp_pallas.1} parent=1 // pred_check
      _
    $region35: #{_mlp_pallas.1} parent=1 // pred_check_branch
      %240 = sbr.rel (0) target = $region37
    $region36: #{_mlp_pallas.1} parent=1 // pred_region
      %s242 = ssub.s32 128, 128
      %243 = vsyncadd [#allocation4], %s242
      %s245 = sshll.u32 [#allocation8], 4
      %s246 = int_to_ptr.vmem [resolvable:$true] %s245
      %248 = dma.vmem_to_hbm [thread:$0]  %s246, 128, %s5, [#allocation4]
    $region37: #{_mlp_pallas.1} parent=1 // pred_fallthru
      _
    // Predicated region
    $region38: #{_mlp_pallas.1} parent=1 // pred_check
      _
    $region39: #{_mlp_pallas.1} parent=1 // pred_check_branch
      %250 = sbr.rel (0) target = $region41
    $region40: #{_mlp_pallas.1} parent=1 // pred_region
      %251 = dma.done [#allocation4], 128
    $region41: #{_mlp_pallas.1} parent=1 // pred_fallthru
      _
    %252 = vsyncpa [#allocation3], 1
    %253 = vsyncpa [#allocation6], 1
    %254 = vsyncpa [#allocation4], 1

</llo_original>
